<compile_context>
chip_gen: v5e
topology: v5e:2x2
jax: 0.10.0
libtpu: 0.0.40
codegen_flags: <defaults>
</compile_context>

<pallas_src>
import jax
import jax.numpy as jnp
from jax.experimental import pallas as pl
from jax.experimental.pallas import tpu as pltpu


def _round_up(x, m):
    return ((x + m - 1) // m) * m


def _cdiv(a, b):
    return -(-a // b)


def generator_kernel(z_ref, w1_ref, b1_ref, w2_ref, b2_ref, out_ref):
    """One (tm, 32) batch tile: matmul -> bias -> LeakyReLU(0.01) -> matmul -> bias."""
    h = jnp.dot(z_ref[...], w1_ref[...], preferred_element_type=jnp.float32)
    h = h + b1_ref[...]                               # (1, hidden) f32 broadcast
    h = jnp.where(h > 0, h, 0.01 * h)                 # LeakyReLU(0.01) in f32
    o = jnp.dot(h.astype(w2_ref.dtype), w2_ref[...],  # bf16 MXU, f32 accumulate
                preferred_element_type=jnp.float32)
    o = o + b2_ref[...]                               # (1, img_pad) f32 broadcast
    out_ref[...] = o.astype(out_ref.dtype)            # bf16, lane-dense writeback
    # TODO(synk): if profiling on v7x shows vld/vst slots binding at very large
    # tm, sub-chunk this body so the (tm, 256) f32 intermediate stays small.


def prepare_generator_params(w1, b1, w2, b2):
    """One-time layout prep: bf16 weights, second layer padded to 128 lanes."""
    z_dim, hidden = w1.shape
    _, img_dim = w2.shape
    img_pad = _round_up(img_dim, 128)
    w1b = w1.astype(jnp.bfloat16)
    w2b = w2.astype(jnp.bfloat16)
    b2f = b2.astype(jnp.float32)
    if img_pad != img_dim:
        w2b = jnp.pad(w2b, ((0, 0), (0, img_pad - img_dim)))
        b2f = jnp.pad(b2f, (0, img_pad - img_dim))
    b1r = b1.astype(jnp.float32).reshape(1, hidden)
    b2r = b2f.reshape(1, img_pad)
    return w1b, b1r, w2b, b2r


def generator_forward(x, label, w1b, b1r, w2b, b2r, *, img_dim, block_m=4096):
    """Batch-tiled pallas_call over prepared (bf16 / padded) parameters."""
    B, x_dim = x.shape
    _, label_dim = label.shape
    z_dim, hidden = w1b.shape
    _, img_pad = w2b.shape
    assert x_dim + label_dim == z_dim
    assert img_pad % 128 == 0 and img_dim <= img_pad

    # Concat is done here (z is ~64 B/row; not worth fusing into the kernel).
    z = jnp.concatenate([x, label], axis=1).astype(jnp.bfloat16)

    # Batch tiling: multiple-of-16 rows (bf16 packing); >=2 grid steps when the
    # batch allows it (v7x megacore); balanced tiles capped at block_m rows.
    b16 = _round_up(B, 16)
    n_steps = max(_cdiv(b16, block_m), min(2, b16 // 16))
    tm = _round_up(_cdiv(b16, n_steps), 16)
    b_pad = n_steps * tm
    if b_pad != B:
        z = jnp.pad(z, ((0, b_pad - B), (0, 0)))

    flops = 2 * b_pad * (z_dim * hidden + hidden * img_pad)
    bytes_accessed = (z.size * 2 + w1b.size * 2 + w2b.size * 2
                      + b1r.size * 4 + b2r.size * 4 + b_pad * img_pad * 2)

    out = pl.pallas_call(
        generator_kernel,
        out_shape=jax.ShapeDtypeStruct((b_pad, img_pad), jnp.bfloat16),
        grid=(n_steps,),
        in_specs=[
            pl.BlockSpec((tm, z_dim), lambda i: (i, 0)),        # z streamed (bf16)
            pl.BlockSpec((z_dim, hidden), lambda i: (0, 0)),    # W1 resident (bf16)
            pl.BlockSpec((1, hidden), lambda i: (0, 0)),        # b1 resident (f32)
            pl.BlockSpec((hidden, img_pad), lambda i: (0, 0)),  # W2 resident (bf16)
            pl.BlockSpec((1, img_pad), lambda i: (0, 0)),       # b2 resident (f32)
        ],
        out_specs=pl.BlockSpec((tm, img_pad), lambda i: (i, 0)),
        compiler_params=pltpu.CompilerParams(
            dimension_semantics=("parallel",),     # batch tiles -> both TCs on v7x
            vmem_limit_bytes=32 * 1024 * 1024,
        ),
        cost_estimate=pl.CostEstimate(
            flops=flops, transcendentals=0, bytes_accessed=bytes_accessed),
    )(z, w1b, b1r, w2b, b2r)

    return out[:B, :img_dim]


def init_params(key, z_dim, hidden, img_dim):
    """Deterministic PyTorch-style (uniform +/-1/sqrt(fan_in)) init, stored (in, out)."""
    k1, k2, k3, k4 = jax.random.split(key, 4)
    lim1 = 1.0 / jnp.sqrt(jnp.float32(z_dim))
    lim2 = 1.0 / jnp.sqrt(jnp.float32(hidden))
    w1 = jax.random.uniform(k1, (z_dim, hidden), jnp.float32, -lim1, lim1)
    b1 = jax.random.uniform(k2, (hidden,), jnp.float32, -lim1, lim1)
    w2 = jax.random.uniform(k3, (hidden, img_dim), jnp.float32, -lim2, lim2)
    b2 = jax.random.uniform(k4, (img_dim,), jnp.float32, -lim2, lim2)
    return w1, b1, w2, b2


if __name__ == "__main__":
    z_dim = 32          # first Linear input dim => x_dim + label_dim must equal 32
    hidden = 256
    img_dim = 64
    batch = 2
    x_dim, label_dim = 24, 8   # concatenated -> z_dim

    key = jax.random.PRNGKey(0)
    kx, kl, kp = jax.random.split(key, 3)
    x = jax.random.normal(kx, (batch, x_dim), jnp.float32)
    label = jax.random.normal(kl, (batch, label_dim), jnp.float32)
    w1, b1, w2, b2 = init_params(kp, z_dim, hidden, img_dim)

    # One-time weight prep, hoisted out of the per-call forward path.
    w1b, b1r, w2b, b2r = jax.block_until_ready(
        prepare_generator_params(w1, b1, w2, b2))

    fwd = jax.jit(generator_forward, static_argnames=("img_dim", "block_m"))
    out = fwd(x, label, w1b, b1r, w2b, b2r, img_dim=img_dim)
    out = jax.block_until_ready(out)

    # Pure-JAX reference mirroring the kernel's bf16 quantization of MXU operands.
    xq = x.astype(jnp.bfloat16).astype(jnp.float32)
    lq = label.astype(jnp.bfloat16).astype(jnp.float32)
    w1q = w1.astype(jnp.bfloat16).astype(jnp.float32)
    w2q = w2.astype(jnp.bfloat16).astype(jnp.float32)
    zr = jnp.concatenate([xq, lq], axis=1)
    h = jnp.dot(zr, w1q, precision=jax.lax.Precision.HIGHEST) + b1
    h = jnp.where(h > 0, h, 0.01 * h)
    hq = h.astype(jnp.bfloat16).astype(jnp.float32)
    ref = jnp.dot(hq, w2q, precision=jax.lax.Precision.HIGHEST) + b2

    assert out.shape == (batch, img_dim)
    assert out.dtype == jnp.bfloat16
    err = float(jnp.max(jnp.abs(out.astype(jnp.float32) - ref)))
    # Output stored in bf16 (per perf review) -> tolerance ~ few bf16 ulps of O(1).
    assert err < 2e-2, err

    print("KERNEL_OK")
</pallas_src>

<mosaic_0001>
module attributes {stable_mosaic.version = 11 : i64} {
  func.func @generator_kernel(%arg0: i32, %arg1: memref<16x32xbf16, #tpu.memory_space<vmem>>, %arg2: memref<32x256xbf16, #tpu.memory_space<vmem>>, %arg3: memref<1x256xf32, #tpu.memory_space<vmem>>, %arg4: memref<256x128xbf16, #tpu.memory_space<vmem>>, %arg5: memref<1x128xf32, #tpu.memory_space<vmem>>, %arg6: memref<16x128xbf16, #tpu.memory_space<vmem>>) attributes {dimension_semantics = [#tpu.dimension_semantics<parallel>], iteration_bounds = array<i64: 1>, scalar_prefetch = 0 : i64, scratch_operands = 0 : i64, tpu.core_type = #tpu.core_type<tc>, window_params = [{transform_indices = @transform_0, window_bounds = array<i64: 16, 32>}, {pipeline_mode = #tpu.pipeline_mode<synchronous>, transform_indices = @transform_1, window_bounds = array<i64: 32, 256>}, {pipeline_mode = #tpu.pipeline_mode<synchronous>, transform_indices = @transform_2, window_bounds = array<i64: 1, 256>}, {pipeline_mode = #tpu.pipeline_mode<synchronous>, transform_indices = @transform_3, window_bounds = array<i64: 256, 128>}, {pipeline_mode = #tpu.pipeline_mode<synchronous>, transform_indices = @transform_4, window_bounds = array<i64: 1, 128>}, {transform_indices = @transform_5, window_bounds = array<i64: 16, 128>}]} {
    %c0 = arith.constant 0 : index
    %c0_0 = arith.constant 0 : index
    %0 = vector.load %arg1[%c0, %c0_0] : memref<16x32xbf16, #tpu.memory_space<vmem>>, vector<16x32xbf16>
    %c0_1 = arith.constant 0 : index
    %c0_2 = arith.constant 0 : index
    %1 = vector.load %arg2[%c0_1, %c0_2] : memref<32x256xbf16, #tpu.memory_space<vmem>>, vector<32x256xbf16>
    %cst = arith.constant dense<0.000000e+00> : vector<16x256xf32>
    %2 = tpu.matmul %0, %1, %cst {dimension_numbers = #tpu.dot_dimension_numbers<[1], [0], [0], [1], [0, 0, 1, 1], [], []>} : vector<16x32xbf16>, vector<32x256xbf16>, vector<16x256xf32> -> vector<16x256xf32>
    %c0_3 = arith.constant 0 : index
    %c0_4 = arith.constant 0 : index
    %3 = vector.load %arg3[%c0_3, %c0_4] : memref<1x256xf32, #tpu.memory_space<vmem>>, vector<1x256xf32>
    %4 = vector.broadcast %3 : vector<1x256xf32> to vector<16x256xf32>
    %5 = arith.addf %2, %4 : vector<16x256xf32>
    %cst_5 = arith.constant 0.000000e+00 : f32
    %6 = vector.broadcast %cst_5 : f32 to vector<16x256xf32>
    %7 = arith.cmpf ogt, %5, %6 : vector<16x256xf32>
    %cst_6 = arith.constant 0.00999999977 : f32
    %8 = vector.broadcast %cst_6 : f32 to vector<16x256xf32>
    %9 = arith.mulf %8, %5 : vector<16x256xf32>
    %10 = arith.select %7, %5, %9 : vector<16x256xi1>, vector<16x256xf32>
    %11 = arith.truncf %10 : vector<16x256xf32> to vector<16x256xbf16>
    %c0_7 = arith.constant 0 : index
    %c0_8 = arith.constant 0 : index
    %12 = vector.load %arg4[%c0_7, %c0_8] : memref<256x128xbf16, #tpu.memory_space<vmem>>, vector<256x128xbf16>
    %cst_9 = arith.constant dense<0.000000e+00> : vector<16x128xf32>
    %13 = tpu.matmul %11, %12, %cst_9 {dimension_numbers = #tpu.dot_dimension_numbers<[1], [0], [0], [1], [0, 0, 1, 1], [], []>} : vector<16x256xbf16>, vector<256x128xbf16>, vector<16x128xf32> -> vector<16x128xf32>
    %c0_10 = arith.constant 0 : index
    %c0_11 = arith.constant 0 : index
    %14 = vector.load %arg5[%c0_10, %c0_11] : memref<1x128xf32, #tpu.memory_space<vmem>>, vector<1x128xf32>
    %15 = vector.broadcast %14 : vector<1x128xf32> to vector<16x128xf32>
    %16 = arith.addf %13, %15 : vector<16x128xf32>
    %17 = arith.truncf %16 : vector<16x128xf32> to vector<16x128xbf16>
    %c0_12 = arith.constant 0 : index
    %c0_13 = arith.constant 0 : index
    %18 = vector.load %arg6[%c0_12, %c0_13] : memref<16x128xbf16, #tpu.memory_space<vmem>>, vector<16x128xbf16>
    tpu.vector_store %arg6[%c0_12, %c0_13], %17 {strides = array<i32>} : memref<16x128xbf16, #tpu.memory_space<vmem>>, vector<16x128xbf16>,
    return
  }
  func.func @transform_0(%arg0: i32) -> (i32, i32) {
    %c0_i32 = arith.constant 0 : i32
    %c0_i32_0 = arith.constant 0 : i32
    return %arg0, %c0_i32 : i32, i32
  }
  func.func @transform_1(%arg0: i32) -> (i32, i32) {
    %c0_i32 = arith.constant 0 : i32
    %c0_i32_0 = arith.constant 0 : i32
    %c0_i32_1 = arith.constant 0 : i32
    return %c0_i32, %c0_i32_0 : i32, i32
  }
  func.func @transform_2(%arg0: i32) -> (i32, i32) {
    %c0_i32 = arith.constant 0 : i32
    %c0_i32_0 = arith.constant 0 : i32
    %c0_i32_1 = arith.constant 0 : i32
    return %c0_i32, %c0_i32_0 : i32, i32
  }
  func.func @transform_3(%arg0: i32) -> (i32, i32) {
    %c0_i32 = arith.constant 0 : i32
    %c0_i32_0 = arith.constant 0 : i32
    %c0_i32_1 = arith.constant 0 : i32
    return %c0_i32, %c0_i32_0 : i32, i32
  }
  func.func @transform_4(%arg0: i32) -> (i32, i32) {
    %c0_i32 = arith.constant 0 : i32
    %c0_i32_0 = arith.constant 0 : i32
    %c0_i32_1 = arith.constant 0 : i32
    return %c0_i32, %c0_i32_0 : i32, i32
  }
  func.func @transform_5(%arg0: i32) -> (i32, i32) {
    %c0_i32 = arith.constant 0 : i32
    %c0_i32_0 = arith.constant 0 : i32
    return %arg0, %c0_i32 : i32, i32
  }
}

</mosaic_0001>

<llo_original>
// kernel: generator_forward.1
$region0: #{generator_forward.1}
  #allocation0 [shape = 'u32[]', space=smem, size = 0x4, offset = 0x4, fixed_abs, tag = 'smem constant byte address 0x4 - core index']
  #allocation1 [shape = 'u32[72,128]{1,0:T(1,128)}', space=vmem, size = 0x9000, scoped, tag = 'internal scratch']
  %s0 = inlined_call_operand.vmem [shape: bf16[16,32], index: 0, kind: input, shape index: {}]
  %s1 = inlined_call_operand.hbm [shape: bf16[32,256], index: 1, kind: input, shape index: {}]
  %s2 = inlined_call_operand.vmem [shape: f32[1,256], index: 2, kind: input, shape index: {}]
  %s3 = inlined_call_operand.hbm [shape: bf16[256,128], index: 3, kind: input, shape index: {}]
  %s4 = inlined_call_operand.vmem [shape: f32[1,128], index: 4, kind: input, shape index: {}]
  %s5 = inlined_call_operand.vmem [shape: bf16[16,128], index: 5, kind: output, shape index: {}]
  %s6 = sld [smem:[#allocation0]]
  $region38: #{generator_forward.1} parent=0
    _
  %s8 = ssub.s32 1, %s6
  %s9 = scalar_select 0, %s8, %s6
  $region1: #{generator_forward.1} parent=0
    #allocation2 [shape = 'u8[16384]{0}', space=vmem, size = 0x4000, scoped, tag = 'input window, operand 1, single buffered']
    #allocation3 [shape = 's32[1]{0}', space=sflag, size = 0x4, scoped, tag = 'scoped memory for generator_forward.1']
    #allocation4 [shape = 'u8[65536]{0}', space=vmem, size = 0x10000, scoped, tag = 'input window, operand 3, single buffered']
    #allocation5 [shape = 's32[1]{0}', space=sflag, size = 0x4, scoped, tag = 'scoped memory for generator_forward.1']
    %10 = vsyncpa [#allocation3], 0
    %11 = vsyncpa [#allocation5], 0
    // Predicated region
    $region2: #{generator_forward.1} parent=1 // pred_check
      _
    $region3: #{generator_forward.1} parent=1 // pred_check_branch
      %13 = sbr.rel (0) target = $region5
    $region4: #{generator_forward.1} parent=1 // pred_region
      _
    $region5: #{generator_forward.1} parent=1 // pred_fallthru
      _
    // Predicated region
    $region6: #{generator_forward.1} parent=1 // pred_check
      _
    $region7: #{generator_forward.1} parent=1 // pred_check_branch
      %15 = sbr.rel (0) target = $region9
    $region8: #{generator_forward.1} parent=1 // pred_region
      %17 = vsyncadd [#allocation3], 0
      %s18 = sshll.u32 %s1, 4
      %s19 = int_to_ptr.hbm [resolvable:$true] %s18
      %s20 = sshll.u32 [#allocation2], 4
      %s21 = int_to_ptr.vmem [resolvable:$true] %s20
      %26 = dma.hbm_to_vmem [thread:$0]  %s19, 512, %s21, [#allocation3], 128, 128, 8
    $region9: #{generator_forward.1} parent=1 // pred_fallthru
      _
    // Predicated region
    $region10: #{generator_forward.1} parent=1 // pred_check
      _
    $region11: #{generator_forward.1} parent=1 // pred_check_branch
      %28 = sbr.rel (0) target = $region13
    $region12: #{generator_forward.1} parent=1 // pred_region
      _
    $region13: #{generator_forward.1} parent=1 // pred_fallthru
      _
    // Predicated region
    $region14: #{generator_forward.1} parent=1 // pred_check
      _
    $region15: #{generator_forward.1} parent=1 // pred_check_branch
      %30 = sbr.rel (0) target = $region17
    $region16: #{generator_forward.1} parent=1 // pred_region
      %32 = vsyncadd [#allocation5], 0
      %s33 = sshll.u32 %s3, 4
      %s34 = int_to_ptr.hbm [resolvable:$true] %s33
      %s35 = sshll.u32 [#allocation4], 4
      %s36 = int_to_ptr.vmem [resolvable:$true] %s35
      %41 = dma.hbm_to_vmem [thread:$0]  %s34, 2048, %s36, [#allocation5], 64, 64, 4
    $region17: #{generator_forward.1} parent=1 // pred_fallthru
      _
    // Predicated region
    $region18: #{generator_forward.1} parent=1 // pred_check
      _
    $region19: #{generator_forward.1} parent=1 // pred_check_branch
      %43 = sbr.rel (0) target = $region21
    $region20: #{generator_forward.1} parent=1 // pred_region
      _
    $region21: #{generator_forward.1} parent=1 // pred_fallthru
      _
    // Predicated region
    $region22: #{generator_forward.1} parent=1 // pred_check
      _
    $region23: #{generator_forward.1} parent=1 // pred_check_branch
      %45 = sbr.rel (0) target = $region25
    $region24: #{generator_forward.1} parent=1 // pred_region
      %47 = dma.done [#allocation3], 512
    $region25: #{generator_forward.1} parent=1 // pred_fallthru
      _
    // Predicated region
    $region26: #{generator_forward.1} parent=1 // pred_check
      _
    $region27: #{generator_forward.1} parent=1 // pred_check_branch
      %49 = sbr.rel (0) target = $region29
    $region28: #{generator_forward.1} parent=1 // pred_region
      %51 = dma.done [#allocation5], 2048
    $region29: #{generator_forward.1} parent=1 // pred_fallthru
      _
    %v53 = vld [vmem:[%s0] sm:$0xf]
    %v54 = vld [vmem:[%s0 + $0x4] sm:$0xf]
    %v55 = vld [vmem:[#allocation2] sm:$0xff]
    %v56 = vld [vmem:[#allocation2 + $0x8] sm:$0xff]
    %v57 = vld [vmem:[#allocation2 + $0x10] sm:$0xff]
    %v58 = vld [vmem:[#allocation2 + $0x18] sm:$0xff]
    %v59 = vld [vmem:[%s2] sm:$0x3]
    %v61 = vperm.slane %v59, 0
    %v62 = vperm.slane %v59, 1
    %v67 = vunpack.c.l.b16 %v53
    %v68 = vunpack.c.l.b16 %v54
    %v69 = vpack.c.b16 %v68, %v67
    %v74 = vunpack.c.l.b16 %v55
    %v75 = vunpack.c.h.b16 %v55
    %v76 = vunpack.c.l.b16 %v56
    %v77 = vunpack.c.h.b16 %v56
    %v78 = vunpack.c.l.b16 %v57
    %v79 = vunpack.c.h.b16 %v57
    %v80 = vunpack.c.l.b16 %v58
    %v81 = vunpack.c.h.b16 %v58
    %v82 = vpack.c.b16 %v76, %v74
    %v83 = vpack.c.b16 %v77, %v75
    %v84 = vpack.c.b16 %v80, %v78
    %v85 = vpack.c.b16 %v81, %v79
    %vm90 = vcmask 261120
    %v92 = vsel %vm90, %v69, 0
    %94 = vmatpush.bf16.msra.mxu0 0
    %95 = vmatpush.bf16.msra.mxu0 0
    %96 = vmatpush.bf16.msra.mxu0 0
    %97 = vmatpush.bf16.msra.mxu0 0
    %98 = vmatpush.bf16.msra.mxu0 0
    %99 = vmatpush.bf16.msra.mxu0 0
    %100 = vmatpush.bf16.msra.mxu0 %v84
    %101 = vmatpush.bf16.msra.mxu0 %v82
    %102 = vmatmul.bf16.gmra.mxu0 %v92
    %v103 = vpop.f32.mrf.mxu0
    %v104 = vadd.f32 %v61, %v103
    %v105 = vpop.f32.mrf.mxu0
    %v106 = vadd.f32 %v61, %v105
    %107 = vdwg.mxu0
    %108 = vmatpush.bf16.msra.mxu0 0
    %109 = vmatpush.bf16.msra.mxu0 0
    %110 = vmatpush.bf16.msra.mxu0 0
    %111 = vmatpush.bf16.msra.mxu0 0
    %112 = vmatpush.bf16.msra.mxu0 0
    %113 = vmatpush.bf16.msra.mxu0 0
    %114 = vmatpush.bf16.msra.mxu0 %v85
    %115 = vmatpush.bf16.msra.mxu0 %v83
    %116 = vmatmul.bf16.gmra.mxu0 %v92
    %v117 = vpop.f32.mrf.mxu0
    %v118 = vadd.f32 %v62, %v117
    %v119 = vpop.f32.mrf.mxu0
    %v120 = vadd.f32 %v62, %v119
    %121 = vdwg.mxu0
    %vm122 = vcmp.gt.f32.partialorder %v104, 0.0
    %vm123 = vcmp.gt.f32.partialorder %v118, 0.0
    %vm124 = vcmp.gt.f32.partialorder %v106, 0.0
    %vm125 = vcmp.gt.f32.partialorder %v120, 0.0
    %v126 = vmul.f32 %v104, 0.01
    %v127 = vmul.f32 %v118, 0.01
    %v128 = vmul.f32 %v106, 0.01
    %v129 = vmul.f32 %v120, 0.01
    %v130 = vsel %vm122, %v104, %v126
    %v131 = vsel %vm123, %v118, %v127
    %v132 = vsel %vm124, %v106, %v128
    %v133 = vsel %vm125, %v120, %v129
    %v134 = vpack.c.bf16 %v132, %v130
    %v135 = vpack.c.bf16 %v133, %v131
    %v136 = vld [vmem:[#allocation4] sm:$0xf]
    %v137 = vld [vmem:[#allocation4 + $0x4] sm:$0xf]
    %v138 = vld [vmem:[#allocation4 + $0x8] sm:$0xf]
    %v139 = vld [vmem:[#allocation4 + $0xc] sm:$0xf]
    %v140 = vld [vmem:[#allocation4 + $0x10] sm:$0xf]
    %v141 = vld [vmem:[#allocation4 + $0x14] sm:$0xf]
    %v142 = vld [vmem:[#allocation4 + $0x18] sm:$0xf]
    %v143 = vld [vmem:[#allocation4 + $0x1c] sm:$0xf]
    %v144 = vld [vmem:[#allocation4 + $0x20] sm:$0xf]
    %v145 = vld [vmem:[#allocation4 + $0x24] sm:$0xf]
    %v146 = vld [vmem:[#allocation4 + $0x28] sm:$0xf]
    %v147 = vld [vmem:[#allocation4 + $0x2c] sm:$0xf]
    %v148 = vld [vmem:[#allocation4 + $0x30] sm:$0xf]
    %v149 = vld [vmem:[#allocation4 + $0x34] sm:$0xf]
    %v150 = vld [vmem:[#allocation4 + $0x38] sm:$0xf]
    %v151 = vld [vmem:[#allocation4 + $0x3c] sm:$0xf]
    %v152 = vld [vmem:[#allocation4 + $0x40] sm:$0xf]
    %v153 = vld [vmem:[#allocation4 + $0x44] sm:$0xf]
    %v154 = vld [vmem:[#allocation4 + $0x48] sm:$0xf]
    %v155 = vld [vmem:[#allocation4 + $0x4c] sm:$0xf]
    %v156 = vld [vmem:[#allocation4 + $0x50] sm:$0xf]
    %v157 = vld [vmem:[#allocation4 + $0x54] sm:$0xf]
    %v158 = vld [vmem:[#allocation4 + $0x58] sm:$0xf]
    %v159 = vld [vmem:[#allocation4 + $0x5c] sm:$0xf]
    %v160 = vld [vmem:[#allocation4 + $0x60] sm:$0xf]
    %v161 = vld [vmem:[#allocation4 + $0x64] sm:$0xf]
    %v162 = vld [vmem:[#allocation4 + $0x68] sm:$0xf]
    %v163 = vld [vmem:[#allocation4 + $0x6c] sm:$0xf]
    %v164 = vld [vmem:[#allocation4 + $0x70] sm:$0xf]
    %v165 = vld [vmem:[#allocation4 + $0x74] sm:$0xf]
    %v166 = vld [vmem:[#allocation4 + $0x78] sm:$0xf]
    %v167 = vld [vmem:[#allocation4 + $0x7c] sm:$0xf]
    %v168 = vld [vmem:[%s4] sm:$0x1]
    %v170 = vperm.slane %v168, 0
    %v204 = vunpack.c.l.b16 %v136
    %v205 = vunpack.c.l.b16 %v137
    %v206 = vunpack.c.l.b16 %v138
    %v207 = vunpack.c.l.b16 %v139
    %v208 = vunpack.c.l.b16 %v140
    %v209 = vunpack.c.l.b16 %v141
    %v210 = vunpack.c.l.b16 %v142
    %v211 = vunpack.c.l.b16 %v143
    %v212 = vunpack.c.l.b16 %v144
    %v213 = vunpack.c.l.b16 %v145
    %v214 = vunpack.c.l.b16 %v146
    %v215 = vunpack.c.l.b16 %v147
    %v216 = vunpack.c.l.b16 %v148
    %v217 = vunpack.c.l.b16 %v149
    %v218 = vunpack.c.l.b16 %v150
    %v219 = vunpack.c.l.b16 %v151
    %v220 = vunpack.c.l.b16 %v152
    %v221 = vunpack.c.l.b16 %v153
    %v222 = vunpack.c.l.b16 %v154
    %v223 = vunpack.c.l.b16 %v155
    %v224 = vunpack.c.l.b16 %v156
    %v225 = vunpack.c.l.b16 %v157
    %v226 = vunpack.c.l.b16 %v158
    %v227 = vunpack.c.l.b16 %v159
    %v228 = vunpack.c.l.b16 %v160
    %v229 = vunpack.c.l.b16 %v161
    %v230 = vunpack.c.l.b16 %v162
    %v231 = vunpack.c.l.b16 %v163
    %v232 = vunpack.c.l.b16 %v164
    %v233 = vunpack.c.l.b16 %v165
    %v234 = vunpack.c.l.b16 %v166
    %v235 = vunpack.c.l.b16 %v167
    %v236 = vpack.c.b16 %v205, %v204
    %v237 = vpack.c.b16 %v207, %v206
    %v238 = vpack.c.b16 %v209, %v208
    %v239 = vpack.c.b16 %v211, %v210
    %v240 = vpack.c.b16 %v213, %v212
    %v241 = vpack.c.b16 %v215, %v214
    %v242 = vpack.c.b16 %v217, %v216
    %v243 = vpack.c.b16 %v219, %v218
    %v244 = vpack.c.b16 %v221, %v220
    %v245 = vpack.c.b16 %v223, %v222
    %v246 = vpack.c.b16 %v225, %v224
    %v247 = vpack.c.b16 %v227, %v226
    %v248 = vpack.c.b16 %v229, %v228
    %v249 = vpack.c.b16 %v231, %v230
    %v250 = vpack.c.b16 %v233, %v232
    %v251 = vpack.c.b16 %v235, %v234
    %268 = vmatpush.bf16.msra.mxu0 %v243
    %269 = vmatpush.bf16.msra.mxu0 %v242
    %270 = vmatpush.bf16.msra.mxu0 %v241
    %271 = vmatpush.bf16.msra.mxu0 %v240
    %272 = vmatpush.bf16.msra.mxu0 %v239
    %273 = vmatpush.bf16.msra.mxu0 %v238
    %274 = vmatpush.bf16.msra.mxu0 %v237
    %275 = vmatpush.bf16.msra.mxu0 %v236
    %276 = vmatmul.bf16.gmra.mxu0 %v134
    %v277 = vpop.f32.mrf.mxu0
    %v278 = vadd.f32 %v170, %v277
    %v279 = vpop.f32.mrf.mxu0
    %v280 = vadd.f32 %v170, %v279
    %281 = vdwg.mxu0
    %282 = vmatpush.bf16.msra.mxu0 %v251
    %283 = vmatpush.bf16.msra.mxu0 %v250
    %284 = vmatpush.bf16.msra.mxu0 %v249
    %285 = vmatpush.bf16.msra.mxu0 %v248
    %286 = vmatpush.bf16.msra.mxu0 %v247
    %287 = vmatpush.bf16.msra.mxu0 %v246
    %288 = vmatpush.bf16.msra.mxu0 %v245
    %289 = vmatpush.bf16.msra.mxu0 %v244
    %290 = vmatmul.bf16.gmra.mxu0 %v135
    %v291 = vpop.f32.mrf.mxu0
    %v292 = vadd.f32 %v278, %v291
    %v293 = vpop.f32.mrf.mxu0
    %v294 = vadd.f32 %v280, %v293
    %295 = vdwg.mxu0
    %v296 = vpack.c.bf16 %v292, %v292
    %v297 = vpack.c.bf16 %v294, %v294
    %298 = vst [vmem:[%s5] sm:$0xf] %v296
    %299 = vst [vmem:[%s5 + $0x4] sm:$0xf] %v297
    // Predicated region
    $region30: #{generator_forward.1} parent=1 // pred_check
      _
    $region31: #{generator_forward.1} parent=1 // pred_check_branch
      %301 = sbr.rel (0) target = $region33
    $region32: #{generator_forward.1} parent=1 // pred_region
      _
    $region33: #{generator_forward.1} parent=1 // pred_fallthru
      _
    // Predicated region
    $region34: #{generator_forward.1} parent=1 // pred_check
      _
    $region35: #{generator_forward.1} parent=1 // pred_check_branch
      %303 = sbr.rel (0) target = $region37
    $region36: #{generator_forward.1} parent=1 // pred_region
      _
    $region37: #{generator_forward.1} parent=1 // pred_fallthru
      _
    %304 = vsyncpa [#allocation3], 1
    %305 = vsyncpa [#allocation5], 1

</llo_original>
